<compile_context>
chip_gen: v6e
topology: v6e:2x2x1
jax: 0.10.0
libtpu: 0.0.40
codegen_flags: <defaults>
</compile_context>

<pallas_src>
import functools

import jax
import jax.numpy as jnp
from jax import lax
from jax.experimental import pallas as pl
from jax.experimental.pallas import tpu as pltpu


def _bottleneck_kernel(x_ref, w1_ref, b1_ref, wdw_ref, b2_ref, w2aug_ref,
                       b3aug_ref, out_ref, *, width, cin):
    """One batch element of the full bottleneck (branch + concat + shuffle).

    x_ref:     (1, 2*Cin, HW)  channels on sublanes, H*W on lanes
    w1_ref:    (P, Cin)        1x1 conv weight, BN scale folded in
    b1_ref:    (P, 1)          folded BN bias
    wdw_ref:   (P, 9)          3x3 depthwise weight (ky*3+kx), BN scale folded in
    b2_ref:    (P, 1)
    w2aug_ref: (Ct, Cin+P)     augmented final 1x1: even rows copy the left half,
                               odd rows are the (BN-scaled) 1x1 conv of the branch
    b3aug_ref: (Ct, 1)
    out_ref:   (1, Ct, HW)     final shuffled output, channels interleaved
    """
    x = x_ref[0]                              # (2*Cin, HW) f32
    hw = x.shape[1]
    p = w1_ref.shape[0]
    ct = w2aug_ref.shape[0]

    xl = x[:cin, :]                           # left half: identity branch
    xr = x[cin:, :]                           # right half: InvertedLayer input

    # --- 1x1 conv (+ folded BN) + ReLU: Cin rank-1 VPU FMAs (K is tiny) ---
    w1 = w1_ref[...]
    acc = w1[:, 0:1] * xr[0:1, :]
    for c in range(1, cin):
        acc = acc + w1[:, c:c + 1] * xr[c:c + 1, :]
    y = jnp.maximum(acc + b1_ref[...], 0.0)   # (P, HW)

    # --- 3x3 depthwise conv (stride 1, pad 1, + folded BN), halo in registers ---
    col = lax.broadcasted_iota(jnp.int32, (1, hw), 1) % width
    ok_l = col >= 1                           # tap at j-1 is inside the image
    ok_r = col <= width - 2                   # tap at j+1 is inside the image

    def shift_flat(a, s):
        # b[:, k] = a[:, k + s], zero-filled where k + s falls outside [0, HW)
        if s == 0:
            return a
        z = jnp.zeros((a.shape[0], abs(s)), a.dtype)
        if s > 0:
            return jnp.concatenate([a[:, s:], z], axis=1)
        return jnp.concatenate([z, a[:, :s]], axis=1)

    wdw = wdw_ref[...]                        # (P, 9)
    acc2 = jnp.zeros((p, hw), jnp.float32)
    for dy in (-1, 0, 1):
        for dx in (-1, 0, 1):
            t = (dy + 1) * 3 + (dx + 1)
            v = shift_flat(y, dy * width + dx)
            if dx == -1:
                v = jnp.where(ok_l, v, 0.0)
            elif dx == 1:
                v = jnp.where(ok_r, v, 0.0)
            acc2 = acc2 + wdw[:, t:t + 1] * v
    z = acc2 + b2_ref[...]                    # (P, HW), no ReLU after dwconv

    # --- final 1x1 conv (+ BN + ReLU) fused with concat + channel shuffle ---
    waug = w2aug_ref[...]
    acc3 = waug[:, 0:1] * xl[0:1, :]
    for c in range(1, cin):
        acc3 = acc3 + waug[:, c:c + 1] * xl[c:c + 1, :]
    for c in range(p):
        acc3 = acc3 + waug[:, cin + c:cin + c + 1] * z[c:c + 1, :]
    raw = acc3 + b3aug_ref[...]               # (Ct, HW)

    # ReLU only on the branch (odd, post-shuffle) channels; left half is identity.
    ch = lax.broadcasted_iota(jnp.int32, (ct, hw), 0)
    out = jnp.where(ch % 2 == 1, jnp.maximum(raw, 0.0), raw)
    out_ref[0] = out.astype(out_ref.dtype)


def _fold_params(params, cin):
    """Fold BN scales into conv weights and build the augmented final projection."""
    p = params["w1"].shape[0]
    ct = cin + p
    w1f = params["s1"][:, None] * params["w1"]                     # (P, Cin)
    b1f = params["b1"][:, None]                                    # (P, 1)
    wdwf = (params["s2"][:, None, None] * params["wdw"]).reshape(p, 9)
    b2f = params["b2"][:, None]
    w2f = params["s3"][:, None] * params["w2"]                     # (P, P)
    # Augmented final projection: out[2q] = left[q]; out[2q+1] = relu(w2f[q].z + b3[q])
    w2aug = jnp.zeros((ct, cin + p), jnp.float32)
    w2aug = w2aug.at[0::2, :cin].set(jnp.eye(cin, dtype=jnp.float32))
    w2aug = w2aug.at[1::2, cin:].set(w2f)
    b3aug = jnp.zeros((ct, 1), jnp.float32).at[1::2, 0].set(params["b3"])
    return w1f, b1f, wdwf, b2f, w2aug, b3aug


def shufflenetv2_bottleneck(x_nchw, params):
    """Forward pass of ShuffleNetv2Bottleneck (stride=1, downsample=None), NCHW."""
    n, c, h, w = x_nchw.shape
    cin = c // 2
    p = params["w1"].shape[0]
    assert p == cin, "stride=1 ShuffleNetv2 block requires planes == inplanes"
    ct = cin + p
    hw = h * w

    w1f, b1f, wdwf, b2f, w2aug, b3aug = _fold_params(params, cin)

    xf = x_nchw.reshape(n, c, hw)            # free reshape: only merges minor dims

    kernel = functools.partial(_bottleneck_kernel, width=w, cin=cin)

    grid_spec = pltpu.PrefetchScalarGridSpec(
        num_scalar_prefetch=0,
        grid=(n,),
        in_specs=[
            pl.BlockSpec((1, c, hw), lambda i: (i, 0, 0)),
            pl.BlockSpec(w1f.shape, lambda i: (0, 0)),
            pl.BlockSpec(b1f.shape, lambda i: (0, 0)),
            pl.BlockSpec(wdwf.shape, lambda i: (0, 0)),
            pl.BlockSpec(b2f.shape, lambda i: (0, 0)),
            pl.BlockSpec(w2aug.shape, lambda i: (0, 0)),
            pl.BlockSpec(b3aug.shape, lambda i: (0, 0)),
        ],
        out_specs=pl.BlockSpec((1, ct, hw), lambda i: (i, 0, 0)),
    )

    # Output kept in f32 for exact comparison; could be bf16 if downstream allows
    # (halves output HBM bytes).
    out = pl.pallas_call(
        kernel,
        out_shape=jax.ShapeDtypeStruct((n, ct, hw), jnp.float32),
        grid_spec=grid_spec,
        compiler_params=pltpu.CompilerParams(
            dimension_semantics=("parallel",)),
    )(xf, w1f, b1f, wdwf, b2f, w2aug, b3aug)

    return out.reshape(n, ct, h, w)          # free reshape back to NCHW


def init_params(key, cin, p):
    """Deterministic parameter init; BatchNorm folded into (scale, bias) vectors."""
    keys = jax.random.split(key, 15)
    w1 = 0.2 * jax.random.normal(keys[0], (p, cin), jnp.float32)    # (out, in)
    wdw = 0.2 * jax.random.normal(keys[1], (p, 3, 3), jnp.float32)  # per-channel 3x3
    w2 = 0.2 * jax.random.normal(keys[2], (p, p), jnp.float32)      # (out, in)

    def bn_fold(kg, kb, km, kv, ch):
        gamma = 1.0 + 0.1 * jax.random.normal(kg, (ch,), jnp.float32)
        beta = 0.1 * jax.random.normal(kb, (ch,), jnp.float32)
        mean = 0.1 * jax.random.normal(km, (ch,), jnp.float32)
        var = 0.5 + 0.1 * jnp.abs(jax.random.normal(kv, (ch,), jnp.float32))
        scale = gamma / jnp.sqrt(var + 1e-5)
        bias = beta - mean * scale
        return scale, bias

    s1, b1 = bn_fold(keys[3], keys[4], keys[5], keys[6], p)
    s2, b2 = bn_fold(keys[7], keys[8], keys[9], keys[10], p)
    s3, b3 = bn_fold(keys[11], keys[12], keys[13], keys[14], p)
    return dict(w1=w1, wdw=wdw, w2=w2, s1=s1, b1=b1, s2=s2, b2=b2, s3=s3, b3=b3)


def ref_forward(x, params):
    """Pure-JAX reference (matches the PyTorch forward semantics, NCHW)."""
    n, c, h, w = x.shape
    cin = c // 2
    p = params["w1"].shape[0]
    hp = lax.Precision.HIGHEST
    left, right = x[:, :cin], x[:, cin:]

    r = jnp.einsum("nchw,pc->nphw", right, params["w1"], precision=hp)
    r = jnp.maximum(r * params["s1"][None, :, None, None]
                    + params["b1"][None, :, None, None], 0.0)

    wdw = params["wdw"][:, None]             # (P, 1, 3, 3) OIHW depthwise
    r = lax.conv_general_dilated(r, wdw, window_strides=(1, 1),
                                 padding=((1, 1), (1, 1)),
                                 dimension_numbers=("NCHW", "OIHW", "NCHW"),
                                 feature_group_count=p, precision=hp)
    r = r * params["s2"][None, :, None, None] + params["b2"][None, :, None, None]

    r = jnp.einsum("nchw,pc->nphw", r, params["w2"], precision=hp)
    r = jnp.maximum(r * params["s3"][None, :, None, None]
                    + params["b3"][None, :, None, None], 0.0)

    out = jnp.concatenate([left, r], axis=1)
    ct = out.shape[1]
    out = out.reshape(n, 2, ct // 2, h, w).transpose(0, 2, 1, 3, 4)
    return out.reshape(n, ct, h, w)


if __name__ == "__main__":
    key = jax.random.PRNGKey(0)
    kx, kp = jax.random.split(key)

    # Module config: inplanes=4, outplanes=8 -> planes = outplanes//2 = 4.
    # Stride=1 path: ChannelSplit halves the channels, so x has 2*inplanes=8.
    N, inplanes, H, W = 2, 4, 16, 16
    outplanes = 2 * inplanes
    planes = outplanes // 2

    x = jax.random.normal(kx, (N, 2 * inplanes, H, W), jnp.float32)
    params = init_params(kp, inplanes, planes)

    out = shufflenetv2_bottleneck(x, params)
    out = jax.block_until_ready(out)

    ref = ref_forward(x, params)
    assert out.shape == (N, outplanes, H, W), out.shape
    if not jnp.allclose(out, ref, rtol=1e-3, atol=1e-3):
        raise AssertionError("Pallas kernel output does not match JAX reference")
    print("KERNEL_OK")
</pallas_src>

<mosaic_0001>
module attributes {stable_mosaic.version = 11 : i64} {
  func.func @_bottleneck_kernel(%arg0: i32, %arg1: memref<1x8x256xf32, #tpu.memory_space<vmem>>, %arg2: memref<4x4xf32, #tpu.memory_space<vmem>>, %arg3: memref<4x1xf32, #tpu.memory_space<vmem>>, %arg4: memref<4x9xf32, #tpu.memory_space<vmem>>, %arg5: memref<4x1xf32, #tpu.memory_space<vmem>>, %arg6: memref<8x8xf32, #tpu.memory_space<vmem>>, %arg7: memref<8x1xf32, #tpu.memory_space<vmem>>, %arg8: memref<1x8x256xf32, #tpu.memory_space<vmem>>) attributes {dimension_semantics = [#tpu.dimension_semantics<parallel>], iteration_bounds = array<i64: 2>, scalar_prefetch = 0 : i64, scratch_operands = 0 : i64, tpu.core_type = #tpu.core_type<tc>, window_params = [{transform_indices = @transform_0, window_bounds = array<i64: 1, 8, 256>}, {pipeline_mode = #tpu.pipeline_mode<synchronous>, transform_indices = @transform_1, window_bounds = array<i64: 4, 4>}, {pipeline_mode = #tpu.pipeline_mode<synchronous>, transform_indices = @transform_2, window_bounds = array<i64: 4, 1>}, {pipeline_mode = #tpu.pipeline_mode<synchronous>, transform_indices = @transform_3, window_bounds = array<i64: 4, 9>}, {pipeline_mode = #tpu.pipeline_mode<synchronous>, transform_indices = @transform_4, window_bounds = array<i64: 4, 1>}, {pipeline_mode = #tpu.pipeline_mode<synchronous>, transform_indices = @transform_5, window_bounds = array<i64: 8, 8>}, {pipeline_mode = #tpu.pipeline_mode<synchronous>, transform_indices = @transform_6, window_bounds = array<i64: 8, 1>}, {transform_indices = @transform_7, window_bounds = array<i64: 1, 8, 256>}]} {
    %c0 = arith.constant 0 : index
    %c0_0 = arith.constant 0 : index
    %c0_1 = arith.constant 0 : index
    %0 = vector.load %arg1[%c0, %c0_0, %c0_1] : memref<1x8x256xf32, #tpu.memory_space<vmem>>, vector<1x8x256xf32>
    %1 = vector.shape_cast %0 : vector<1x8x256xf32> to vector<8x256xf32>
    %2 = vector.extract_strided_slice %1 {offsets = [0, 0], sizes = [4, 256], strides = [1, 1]} : vector<8x256xf32> to vector<4x256xf32>
    %3 = vector.extract_strided_slice %1 {offsets = [4, 0], sizes = [4, 256], strides = [1, 1]} : vector<8x256xf32> to vector<4x256xf32>
    %c0_2 = arith.constant 0 : index
    %c0_3 = arith.constant 0 : index
    %4 = vector.load %arg2[%c0_2, %c0_3] : memref<4x4xf32, #tpu.memory_space<vmem>>, vector<4x4xf32>
    %5 = vector.extract_strided_slice %4 {offsets = [0, 0], sizes = [4, 1], strides = [1, 1]} : vector<4x4xf32> to vector<4x1xf32>
    %6 = vector.extract_strided_slice %3 {offsets = [0, 0], sizes = [1, 256], strides = [1, 1]} : vector<4x256xf32> to vector<1x256xf32>
    %7 = vector.broadcast %5 : vector<4x1xf32> to vector<4x256xf32>
    %8 = vector.broadcast %6 : vector<1x256xf32> to vector<4x256xf32>
    %9 = arith.mulf %7, %8 : vector<4x256xf32>
    %10 = vector.extract_strided_slice %4 {offsets = [0, 1], sizes = [4, 1], strides = [1, 1]} : vector<4x4xf32> to vector<4x1xf32>
    %11 = vector.extract_strided_slice %3 {offsets = [1, 0], sizes = [1, 256], strides = [1, 1]} : vector<4x256xf32> to vector<1x256xf32>
    %12 = vector.broadcast %10 : vector<4x1xf32> to vector<4x256xf32>
    %13 = vector.broadcast %11 : vector<1x256xf32> to vector<4x256xf32>
    %14 = arith.mulf %12, %13 : vector<4x256xf32>
    %15 = arith.addf %9, %14 : vector<4x256xf32>
    %16 = vector.extract_strided_slice %4 {offsets = [0, 2], sizes = [4, 1], strides = [1, 1]} : vector<4x4xf32> to vector<4x1xf32>
    %17 = vector.extract_strided_slice %3 {offsets = [2, 0], sizes = [1, 256], strides = [1, 1]} : vector<4x256xf32> to vector<1x256xf32>
    %18 = vector.broadcast %16 : vector<4x1xf32> to vector<4x256xf32>
    %19 = vector.broadcast %17 : vector<1x256xf32> to vector<4x256xf32>
    %20 = arith.mulf %18, %19 : vector<4x256xf32>
    %21 = arith.addf %15, %20 : vector<4x256xf32>
    %22 = vector.extract_strided_slice %4 {offsets = [0, 3], sizes = [4, 1], strides = [1, 1]} : vector<4x4xf32> to vector<4x1xf32>
    %23 = vector.extract_strided_slice %3 {offsets = [3, 0], sizes = [1, 256], strides = [1, 1]} : vector<4x256xf32> to vector<1x256xf32>
    %24 = vector.broadcast %22 : vector<4x1xf32> to vector<4x256xf32>
    %25 = vector.broadcast %23 : vector<1x256xf32> to vector<4x256xf32>
    %26 = arith.mulf %24, %25 : vector<4x256xf32>
    %27 = arith.addf %21, %26 : vector<4x256xf32>
    %c0_4 = arith.constant 0 : index
    %c0_5 = arith.constant 0 : index
    %28 = vector.load %arg3[%c0_4, %c0_5] : memref<4x1xf32, #tpu.memory_space<vmem>>, vector<4x1xf32>
    %29 = vector.broadcast %28 : vector<4x1xf32> to vector<4x256xf32>
    %30 = arith.addf %27, %29 : vector<4x256xf32>
    %cst = arith.constant 0.000000e+00 : f32
    %31 = vector.broadcast %cst : f32 to vector<4x256xf32>
    %32 = arith.maximumf %30, %31 : vector<4x256xf32>
    %33 = tpu.iota {dimensions = array<i32: 1>} : vector<1x256xi32>
    %c16_i32 = arith.constant 16 : i32
    %c0_i32 = arith.constant 0 : i32
    %34 = arith.cmpi eq, %c16_i32, %c0_i32 : i32
    %c1_i32 = arith.constant 1 : i32
    %35 = arith.select %34, %c1_i32, %c16_i32 : i32
    %36 = vector.broadcast %35 : i32 to vector<1x256xi32>
    %37 = arith.remsi %33, %36 : vector<1x256xi32>
    %c0_i32_6 = arith.constant 0 : i32
    %38 = vector.broadcast %c0_i32_6 : i32 to vector<1x256xi32>
    %39 = arith.cmpi ne, %37, %38 : vector<1x256xi32>
    %c0_i32_7 = arith.constant 0 : i32
    %40 = vector.broadcast %c0_i32_7 : i32 to vector<1x256xi32>
    %41 = arith.cmpi slt, %37, %40 : vector<1x256xi32>
    %c0_i32_8 = arith.constant 0 : i32
    %42 = arith.cmpi slt, %35, %c0_i32_8 : i32
    %43 = vector.broadcast %42 : i1 to vector<1x256xi1>
    %44 = vector.broadcast %43 : vector<1x256xi1> to vector<1x256xi1>
    %45 = arith.xori %41, %44 : vector<1x256xi1>
    %46 = arith.andi %45, %39 : vector<1x256xi1>
    %47 = vector.broadcast %35 : i32 to vector<1x256xi32>
    %48 = arith.addi %37, %47 : vector<1x256xi32>
    %49 = arith.select %46, %48, %37 : vector<1x256xi1>, vector<1x256xi32>
    %c1_i32_9 = arith.constant 1 : i32
    %50 = vector.broadcast %c1_i32_9 : i32 to vector<1x256xi32>
    %51 = arith.cmpi sge, %49, %50 : vector<1x256xi32>
    %c14_i32 = arith.constant 14 : i32
    %52 = vector.broadcast %c14_i32 : i32 to vector<1x256xi32>
    %53 = arith.cmpi sle, %49, %52 : vector<1x256xi32>
    %c0_10 = arith.constant 0 : index
    %c0_11 = arith.constant 0 : index
    %54 = vector.load %arg4[%c0_10, %c0_11] : memref<4x9xf32, #tpu.memory_space<vmem>>, vector<4x9xf32>
    %cst_12 = arith.constant 0.000000e+00 : f32
    %55 = vector.broadcast %cst_12 : f32 to vector<4x256xf32>
    %cst_13 = arith.constant 0.000000e+00 : f32
    %56 = vector.broadcast %cst_13 : f32 to vector<4x17xf32>
    %57 = vector.extract_strided_slice %32 {offsets = [0, 0], sizes = [4, 239], strides = [1, 1]} : vector<4x256xf32> to vector<4x239xf32>
    %58 = tpu.concatenate %56, %57 in 1 : vector<4x17xf32>, vector<4x239xf32> -> vector<4x256xf32>
    %cst_14 = arith.constant 0.000000e+00 : f32
    %59 = vector.shape_cast %51 : vector<1x256xi1> to vector<1x256xi1>
    %60 = vector.broadcast %59 : vector<1x256xi1> to vector<4x256xi1>
    %61 = vector.broadcast %cst_14 : f32 to vector<4x256xf32>
    %62 = arith.select %60, %58, %61 : vector<4x256xi1>, vector<4x256xf32>
    %63 = vector.extract_strided_slice %54 {offsets = [0, 0], sizes = [4, 1], strides = [1, 1]} : vector<4x9xf32> to vector<4x1xf32>
    %64 = vector.broadcast %63 : vector<4x1xf32> to vector<4x256xf32>
    %65 = arith.mulf %64, %62 : vector<4x256xf32>
    %66 = arith.addf %55, %65 : vector<4x256xf32>
    %cst_15 = arith.constant 0.000000e+00 : f32
    %67 = vector.broadcast %cst_15 : f32 to vector<4x16xf32>
    %68 = vector.extract_strided_slice %32 {offsets = [0, 0], sizes = [4, 240], strides = [1, 1]} : vector<4x256xf32> to vector<4x240xf32>
    %69 = tpu.concatenate %67, %68 in 1 : vector<4x16xf32>, vector<4x240xf32> -> vector<4x256xf32>
    %70 = vector.extract_strided_slice %54 {offsets = [0, 1], sizes = [4, 1], strides = [1, 1]} : vector<4x9xf32> to vector<4x1xf32>
    %71 = vector.broadcast %70 : vector<4x1xf32> to vector<4x256xf32>
    %72 = arith.mulf %71, %69 : vector<4x256xf32>
    %73 = arith.addf %66, %72 : vector<4x256xf32>
    %cst_16 = arith.constant 0.000000e+00 : f32
    %74 = vector.broadcast %cst_16 : f32 to vector<4x15xf32>
    %75 = vector.extract_strided_slice %32 {offsets = [0, 0], sizes = [4, 241], strides = [1, 1]} : vector<4x256xf32> to vector<4x241xf32>
    %76 = tpu.concatenate %74, %75 in 1 : vector<4x15xf32>, vector<4x241xf32> -> vector<4x256xf32>
    %cst_17 = arith.constant 0.000000e+00 : f32
    %77 = vector.shape_cast %53 : vector<1x256xi1> to vector<1x256xi1>
    %78 = vector.broadcast %77 : vector<1x256xi1> to vector<4x256xi1>
    %79 = vector.broadcast %cst_17 : f32 to vector<4x256xf32>
    %80 = arith.select %78, %76, %79 : vector<4x256xi1>, vector<4x256xf32>
    %81 = vector.extract_strided_slice %54 {offsets = [0, 2], sizes = [4, 1], strides = [1, 1]} : vector<4x9xf32> to vector<4x1xf32>
    %82 = vector.broadcast %81 : vector<4x1xf32> to vector<4x256xf32>
    %83 = arith.mulf %82, %80 : vector<4x256xf32>
    %84 = arith.addf %73, %83 : vector<4x256xf32>
    %cst_18 = arith.constant 0.000000e+00 : f32
    %85 = vector.broadcast %cst_18 : f32 to vector<4x1xf32>
    %86 = vector.extract_strided_slice %32 {offsets = [0, 0], sizes = [4, 255], strides = [1, 1]} : vector<4x256xf32> to vector<4x255xf32>
    %87 = tpu.concatenate %85, %86 in 1 : vector<4x1xf32>, vector<4x255xf32> -> vector<4x256xf32>
    %cst_19 = arith.constant 0.000000e+00 : f32
    %88 = vector.shape_cast %51 : vector<1x256xi1> to vector<1x256xi1>
    %89 = vector.broadcast %88 : vector<1x256xi1> to vector<4x256xi1>
    %90 = vector.broadcast %cst_19 : f32 to vector<4x256xf32>
    %91 = arith.select %89, %87, %90 : vector<4x256xi1>, vector<4x256xf32>
    %92 = vector.extract_strided_slice %54 {offsets = [0, 3], sizes = [4, 1], strides = [1, 1]} : vector<4x9xf32> to vector<4x1xf32>
    %93 = vector.broadcast %92 : vector<4x1xf32> to vector<4x256xf32>
    %94 = arith.mulf %93, %91 : vector<4x256xf32>
    %95 = arith.addf %84, %94 : vector<4x256xf32>
    %96 = vector.extract_strided_slice %54 {offsets = [0, 4], sizes = [4, 1], strides = [1, 1]} : vector<4x9xf32> to vector<4x1xf32>
    %97 = vector.broadcast %96 : vector<4x1xf32> to vector<4x256xf32>
    %98 = arith.mulf %97, %32 : vector<4x256xf32>
    %99 = arith.addf %95, %98 : vector<4x256xf32>
    %cst_20 = arith.constant 0.000000e+00 : f32
    %100 = vector.broadcast %cst_20 : f32 to vector<4x1xf32>
    %101 = vector.extract_strided_slice %32 {offsets = [0, 1], sizes = [4, 255], strides = [1, 1]} : vector<4x256xf32> to vector<4x255xf32>
    %102 = tpu.concatenate %101, %100 in 1 : vector<4x255xf32>, vector<4x1xf32> -> vector<4x256xf32>
    %cst_21 = arith.constant 0.000000e+00 : f32
    %103 = vector.shape_cast %53 : vector<1x256xi1> to vector<1x256xi1>
    %104 = vector.broadcast %103 : vector<1x256xi1> to vector<4x256xi1>
    %105 = vector.broadcast %cst_21 : f32 to vector<4x256xf32>
    %106 = arith.select %104, %102, %105 : vector<4x256xi1>, vector<4x256xf32>
    %107 = vector.extract_strided_slice %54 {offsets = [0, 5], sizes = [4, 1], strides = [1, 1]} : vector<4x9xf32> to vector<4x1xf32>
    %108 = vector.broadcast %107 : vector<4x1xf32> to vector<4x256xf32>
    %109 = arith.mulf %108, %106 : vector<4x256xf32>
    %110 = arith.addf %99, %109 : vector<4x256xf32>
    %cst_22 = arith.constant 0.000000e+00 : f32
    %111 = vector.broadcast %cst_22 : f32 to vector<4x15xf32>
    %112 = vector.extract_strided_slice %32 {offsets = [0, 15], sizes = [4, 241], strides = [1, 1]} : vector<4x256xf32> to vector<4x241xf32>
    %113 = tpu.concatenate %112, %111 in 1 : vector<4x241xf32>, vector<4x15xf32> -> vector<4x256xf32>
    %cst_23 = arith.constant 0.000000e+00 : f32
    %114 = vector.shape_cast %51 : vector<1x256xi1> to vector<1x256xi1>
    %115 = vector.broadcast %114 : vector<1x256xi1> to vector<4x256xi1>
    %116 = vector.broadcast %cst_23 : f32 to vector<4x256xf32>
    %117 = arith.select %115, %113, %116 : vector<4x256xi1>, vector<4x256xf32>
    %118 = vector.extract_strided_slice %54 {offsets = [0, 6], sizes = [4, 1], strides = [1, 1]} : vector<4x9xf32> to vector<4x1xf32>
    %119 = vector.broadcast %118 : vector<4x1xf32> to vector<4x256xf32>
    %120 = arith.mulf %119, %117 : vector<4x256xf32>
    %121 = arith.addf %110, %120 : vector<4x256xf32>
    %cst_24 = arith.constant 0.000000e+00 : f32
    %122 = vector.broadcast %cst_24 : f32 to vector<4x16xf32>
    %123 = vector.extract_strided_slice %32 {offsets = [0, 16], sizes = [4, 240], strides = [1, 1]} : vector<4x256xf32> to vector<4x240xf32>
    %124 = tpu.concatenate %123, %122 in 1 : vector<4x240xf32>, vector<4x16xf32> -> vector<4x256xf32>
    %125 = vector.extract_strided_slice %54 {offsets = [0, 7], sizes = [4, 1], strides = [1, 1]} : vector<4x9xf32> to vector<4x1xf32>
    %126 = vector.broadcast %125 : vector<4x1xf32> to vector<4x256xf32>
    %127 = arith.mulf %126, %124 : vector<4x256xf32>
    %128 = arith.addf %121, %127 : vector<4x256xf32>
    %cst_25 = arith.constant 0.000000e+00 : f32
    %129 = vector.broadcast %cst_25 : f32 to vector<4x17xf32>
    %130 = vector.extract_strided_slice %32 {offsets = [0, 17], sizes = [4, 239], strides = [1, 1]} : vector<4x256xf32> to vector<4x239xf32>
    %131 = tpu.concatenate %130, %129 in 1 : vector<4x239xf32>, vector<4x17xf32> -> vector<4x256xf32>
    %cst_26 = arith.constant 0.000000e+00 : f32
    %132 = vector.shape_cast %53 : vector<1x256xi1> to vector<1x256xi1>
    %133 = vector.broadcast %132 : vector<1x256xi1> to vector<4x256xi1>
    %134 = vector.broadcast %cst_26 : f32 to vector<4x256xf32>
    %135 = arith.select %133, %131, %134 : vector<4x256xi1>, vector<4x256xf32>
    %136 = vector.extract_strided_slice %54 {offsets = [0, 8], sizes = [4, 1], strides = [1, 1]} : vector<4x9xf32> to vector<4x1xf32>
    %137 = vector.broadcast %136 : vector<4x1xf32> to vector<4x256xf32>
    %138 = arith.mulf %137, %135 : vector<4x256xf32>
    %139 = arith.addf %128, %138 : vector<4x256xf32>
    %c0_27 = arith.constant 0 : index
    %c0_28 = arith.constant 0 : index
    %140 = vector.load %arg5[%c0_27, %c0_28] : memref<4x1xf32, #tpu.memory_space<vmem>>, vector<4x1xf32>
    %141 = vector.broadcast %140 : vector<4x1xf32> to vector<4x256xf32>
    %142 = arith.addf %139, %141 : vector<4x256xf32>
    %c0_29 = arith.constant 0 : index
    %c0_30 = arith.constant 0 : index
    %143 = vector.load %arg6[%c0_29, %c0_30] : memref<8x8xf32, #tpu.memory_space<vmem>>, vector<8x8xf32>
    %144 = vector.extract_strided_slice %143 {offsets = [0, 0], sizes = [8, 1], strides = [1, 1]} : vector<8x8xf32> to vector<8x1xf32>
    %145 = vector.extract_strided_slice %2 {offsets = [0, 0], sizes = [1, 256], strides = [1, 1]} : vector<4x256xf32> to vector<1x256xf32>
    %146 = vector.broadcast %144 : vector<8x1xf32> to vector<8x256xf32>
    %147 = vector.broadcast %145 : vector<1x256xf32> to vector<8x256xf32>
    %148 = arith.mulf %146, %147 : vector<8x256xf32>
    %149 = vector.extract_strided_slice %143 {offsets = [0, 1], sizes = [8, 1], strides = [1, 1]} : vector<8x8xf32> to vector<8x1xf32>
    %150 = vector.extract_strided_slice %2 {offsets = [1, 0], sizes = [1, 256], strides = [1, 1]} : vector<4x256xf32> to vector<1x256xf32>
    %151 = vector.broadcast %149 : vector<8x1xf32> to vector<8x256xf32>
    %152 = vector.broadcast %150 : vector<1x256xf32> to vector<8x256xf32>
    %153 = arith.mulf %151, %152 : vector<8x256xf32>
    %154 = arith.addf %148, %153 : vector<8x256xf32>
    %155 = vector.extract_strided_slice %143 {offsets = [0, 2], sizes = [8, 1], strides = [1, 1]} : vector<8x8xf32> to vector<8x1xf32>
    %156 = vector.extract_strided_slice %2 {offsets = [2, 0], sizes = [1, 256], strides = [1, 1]} : vector<4x256xf32> to vector<1x256xf32>
    %157 = vector.broadcast %155 : vector<8x1xf32> to vector<8x256xf32>
    %158 = vector.broadcast %156 : vector<1x256xf32> to vector<8x256xf32>
    %159 = arith.mulf %157, %158 : vector<8x256xf32>
    %160 = arith.addf %154, %159 : vector<8x256xf32>
    %161 = vector.extract_strided_slice %143 {offsets = [0, 3], sizes = [8, 1], strides = [1, 1]} : vector<8x8xf32> to vector<8x1xf32>
    %162 = vector.extract_strided_slice %2 {offsets = [3, 0], sizes = [1, 256], strides = [1, 1]} : vector<4x256xf32> to vector<1x256xf32>
    %163 = vector.broadcast %161 : vector<8x1xf32> to vector<8x256xf32>
    %164 = vector.broadcast %162 : vector<1x256xf32> to vector<8x256xf32>
    %165 = arith.mulf %163, %164 : vector<8x256xf32>
    %166 = arith.addf %160, %165 : vector<8x256xf32>
    %167 = vector.extract_strided_slice %143 {offsets = [0, 4], sizes = [8, 1], strides = [1, 1]} : vector<8x8xf32> to vector<8x1xf32>
    %168 = vector.extract_strided_slice %142 {offsets = [0, 0], sizes = [1, 256], strides = [1, 1]} : vector<4x256xf32> to vector<1x256xf32>
    %169 = vector.broadcast %167 : vector<8x1xf32> to vector<8x256xf32>
    %170 = vector.broadcast %168 : vector<1x256xf32> to vector<8x256xf32>
    %171 = arith.mulf %169, %170 : vector<8x256xf32>
    %172 = arith.addf %166, %171 : vector<8x256xf32>
    %173 = vector.extract_strided_slice %143 {offsets = [0, 5], sizes = [8, 1], strides = [1, 1]} : vector<8x8xf32> to vector<8x1xf32>
    %174 = vector.extract_strided_slice %142 {offsets = [1, 0], sizes = [1, 256], strides = [1, 1]} : vector<4x256xf32> to vector<1x256xf32>
    %175 = vector.broadcast %173 : vector<8x1xf32> to vector<8x256xf32>
    %176 = vector.broadcast %174 : vector<1x256xf32> to vector<8x256xf32>
    %177 = arith.mulf %175, %176 : vector<8x256xf32>
    %178 = arith.addf %172, %177 : vector<8x256xf32>
    %179 = vector.extract_strided_slice %143 {offsets = [0, 6], sizes = [8, 1], strides = [1, 1]} : vector<8x8xf32> to vector<8x1xf32>
    %180 = vector.extract_strided_slice %142 {offsets = [2, 0], sizes = [1, 256], strides = [1, 1]} : vector<4x256xf32> to vector<1x256xf32>
    %181 = vector.broadcast %179 : vector<8x1xf32> to vector<8x256xf32>
    %182 = vector.broadcast %180 : vector<1x256xf32> to vector<8x256xf32>
    %183 = arith.mulf %181, %182 : vector<8x256xf32>
    %184 = arith.addf %178, %183 : vector<8x256xf32>
    %185 = vector.extract_strided_slice %143 {offsets = [0, 7], sizes = [8, 1], strides = [1, 1]} : vector<8x8xf32> to vector<8x1xf32>
    %186 = vector.extract_strided_slice %142 {offsets = [3, 0], sizes = [1, 256], strides = [1, 1]} : vector<4x256xf32> to vector<1x256xf32>
    %187 = vector.broadcast %185 : vector<8x1xf32> to vector<8x256xf32>
    %188 = vector.broadcast %186 : vector<1x256xf32> to vector<8x256xf32>
    %189 = arith.mulf %187, %188 : vector<8x256xf32>
    %190 = arith.addf %184, %189 : vector<8x256xf32>
    %c0_31 = arith.constant 0 : index
    %c0_32 = arith.constant 0 : index
    %191 = vector.load %arg7[%c0_31, %c0_32] : memref<8x1xf32, #tpu.memory_space<vmem>>, vector<8x1xf32>
    %192 = vector.broadcast %191 : vector<8x1xf32> to vector<8x256xf32>
    %193 = arith.addf %190, %192 : vector<8x256xf32>
    %194 = tpu.iota {dimensions = array<i32: 0>} : vector<8x256xi32>
    %c2_i32 = arith.constant 2 : i32
    %c0_i32_33 = arith.constant 0 : i32
    %195 = arith.cmpi eq, %c2_i32, %c0_i32_33 : i32
    %c1_i32_34 = arith.constant 1 : i32
    %196 = arith.select %195, %c1_i32_34, %c2_i32 : i32
    %197 = vector.broadcast %196 : i32 to vector<8x256xi32>
    %198 = arith.remsi %194, %197 : vector<8x256xi32>
    %c0_i32_35 = arith.constant 0 : i32
    %199 = vector.broadcast %c0_i32_35 : i32 to vector<8x256xi32>
    %200 = arith.cmpi ne, %198, %199 : vector<8x256xi32>
    %c0_i32_36 = arith.constant 0 : i32
    %201 = vector.broadcast %c0_i32_36 : i32 to vector<8x256xi32>
    %202 = arith.cmpi slt, %198, %201 : vector<8x256xi32>
    %c0_i32_37 = arith.constant 0 : i32
    %203 = arith.cmpi slt, %196, %c0_i32_37 : i32
    %204 = vector.broadcast %203 : i1 to vector<8x256xi1>
    %205 = vector.broadcast %204 : vector<8x256xi1> to vector<8x256xi1>
    %206 = arith.xori %202, %205 : vector<8x256xi1>
    %207 = arith.andi %206, %200 : vector<8x256xi1>
    %208 = vector.broadcast %196 : i32 to vector<8x256xi32>
    %209 = arith.addi %198, %208 : vector<8x256xi32>
    %210 = arith.select %207, %209, %198 : vector<8x256xi1>, vector<8x256xi32>
    %c1_i32_38 = arith.constant 1 : i32
    %211 = vector.broadcast %c1_i32_38 : i32 to vector<8x256xi32>
    %212 = arith.cmpi eq, %210, %211 : vector<8x256xi32>
    %cst_39 = arith.constant 0.000000e+00 : f32
    %213 = vector.broadcast %cst_39 : f32 to vector<8x256xf32>
    %214 = arith.maximumf %193, %213 : vector<8x256xf32>
    %215 = arith.select %212, %214, %193 : vector<8x256xi1>, vector<8x256xf32>
    %c0_40 = arith.constant 0 : index
    %c0_41 = arith.constant 0 : index
    %c0_42 = arith.constant 0 : index
    %216 = vector.load %arg8[%c0_40, %c0_41, %c0_42] : memref<1x8x256xf32, #tpu.memory_space<vmem>>, vector<1x8x256xf32>
    %217 = vector.shape_cast %216 : vector<1x8x256xf32> to vector<8x256xf32>
    %218 = vector.shape_cast %215 : vector<8x256xf32> to vector<1x8x256xf32>
    tpu.vector_store %arg8[%c0_40, %c0_41, %c0_42], %218 {strides = array<i32>} : memref<1x8x256xf32, #tpu.memory_space<vmem>>, vector<1x8x256xf32>,
    return
  }
  func.func @transform_0(%arg0: i32) -> (i32, i32, i32) {
    %c0_i32 = arith.constant 0 : i32
    %c0_i32_0 = arith.constant 0 : i32
    %c0_i32_1 = arith.constant 0 : i32
    return %arg0, %c0_i32, %c0_i32_0 : i32, i32, i32
  }
  func.func @transform_1(%arg0: i32) -> (i32, i32) {
    %c0_i32 = arith.constant 0 : i32
    %c0_i32_0 = arith.constant 0 : i32
    %c0_i32_1 = arith.constant 0 : i32
    return %c0_i32, %c0_i32_0 : i32, i32
  }
  func.func @transform_2(%arg0: i32) -> (i32, i32) {
    %c0_i32 = arith.constant 0 : i32
    %c0_i32_0 = arith.constant 0 : i32
    %c0_i32_1 = arith.constant 0 : i32
    return %c0_i32, %c0_i32_0 : i32, i32
  }
  func.func @transform_3(%arg0: i32) -> (i32, i32) {
    %c0_i32 = arith.constant 0 : i32
    %c0_i32_0 = arith.constant 0 : i32
    %c0_i32_1 = arith.constant 0 : i32
    return %c0_i32, %c0_i32_0 : i32, i32
  }
  func.func @transform_4(%arg0: i32) -> (i32, i32) {
    %c0_i32 = arith.constant 0 : i32
    %c0_i32_0 = arith.constant 0 : i32
    %c0_i32_1 = arith.constant 0 : i32
    return %c0_i32, %c0_i32_0 : i32, i32
  }
  func.func @transform_5(%arg0: i32) -> (i32, i32) {
    %c0_i32 = arith.constant 0 : i32
    %c0_i32_0 = arith.constant 0 : i32
    %c0_i32_1 = arith.constant 0 : i32
    return %c0_i32, %c0_i32_0 : i32, i32
  }
  func.func @transform_6(%arg0: i32) -> (i32, i32) {
    %c0_i32 = arith.constant 0 : i32
    %c0_i32_0 = arith.constant 0 : i32
    %c0_i32_1 = arith.constant 0 : i32
    return %c0_i32, %c0_i32_0 : i32, i32
  }
  func.func @transform_7(%arg0: i32) -> (i32, i32, i32) {
    %c0_i32 = arith.constant 0 : i32
    %c0_i32_0 = arith.constant 0 : i32
    %c0_i32_1 = arith.constant 0 : i32
    return %arg0, %c0_i32, %c0_i32_0 : i32, i32, i32
  }
}

</mosaic_0001>

<llo_original>
// kernel: tpu_custom_call.1
$region0: #{tpu_custom_call.1}
  #allocation0 [shape = 'u32[]', space=smem, size = 0x4, offset = 0x4, fixed_abs, tag = 'smem constant byte address 0x4 - core index']
  #allocation1 [shape = 'u32[144,128]{1,0:T(1,128)}', space=vmem, size = 0x12000, scoped, tag = 'internal scratch']
  %s0 = inlined_call_operand.hbm [shape: f32[2,8,256], index: 0, kind: input, shape index: {}]
  %s1 = inlined_call_operand.vmem [shape: f32[4,4], index: 1, kind: input, shape index: {}]
  %s2 = inlined_call_operand.vmem [shape: f32[4,1], index: 2, kind: input, shape index: {}]
  %s3 = inlined_call_operand.vmem [shape: f32[4,9], index: 3, kind: input, shape index: {}]
  %s4 = inlined_call_operand.vmem [shape: f32[4,1], index: 4, kind: input, shape index: {}]
  %s5 = inlined_call_operand.vmem [shape: f32[8,8], index: 5, kind: input, shape index: {}]
  %s6 = inlined_call_operand.vmem [shape: f32[8,1], index: 6, kind: input, shape index: {}]
  %s7 = inlined_call_operand.hbm [shape: f32[2,8,256], index: 7, kind: output, shape index: {}]
  %s8 = sld [smem:[#allocation0]]
  $region65: #{tpu_custom_call.1} parent=0
    _
  %s10 = ssub.s32 1, %s8
  %s11 = scalar_select 0, %s10, %s8
  $region1: #{tpu_custom_call.1} parent=0
    #allocation2 [shape = 'u8[16384]{0}', space=vmem, size = 0x4000, scoped, tag = 'input window, operand 0']
    #allocation3 [shape = 's32[2]{0}', space=sflag, size = 0x8, scoped, tag = 'scoped memory for tpu_custom_call.1']
    #allocation4 [shape = 's32[2]{0}', space=sflag, size = 0x8, scoped, tag = 'scoped memory for tpu_custom_call.1']
    #allocation5 [shape = 'u8[16384]{0}', space=vmem, size = 0x4000, scoped, tag = 'output window, operand 0']
    %12 = vsyncpa [#allocation3], 0
    %s13 = scalar_lea.sflag [#allocation3], 1
    %14 = vsyncpa %s13, 0
    %15 = vsyncpa [#allocation4], 0
    %s16 = scalar_lea.sflag [#allocation4], 1
    %17 = vsyncpa %s16, 0
    loop: start=0, step=1, limit=4
    $region2: #{tpu_custom_call.1} parent=1 // loop_pre_header
      _
    $region3: #{tpu_custom_call.1} parent=1 // loop_header
      %s19 = sphi 0, %s23
      %p20 = scmp.ge.s32.totalorder %s19, 4
      %s29 = sphi 0, %s31
      %s32 = sphi 0, %s29
      %s33 = sphi 0, %s32
      %s49 = sphi 0, %s33
      %s53 = sphi 0, %s53
      %s55 = sphi 0, %s53
      %s56 = sphi 0, %s55
      %s70 = sphi 0, %s56
      %s74 = sphi 0, %s74
      %s76 = sphi 0, %s74
      %s77 = sphi 0, %s76
      %s91 = sphi 0, %s77
      %s95 = sphi 0, %s95
      %s97 = sphi 0, %s95
      %s98 = sphi 0, %s97
      %s112 = sphi 0, %s98
      %s116 = sphi 0, %s116
      %s118 = sphi 0, %s116
      %s119 = sphi 0, %s118
      %s133 = sphi 0, %s119
      %s137 = sphi 0, %s137
      %s139 = sphi 0, %s137
      %s140 = sphi 0, %s139
      %s154 = sphi 0, %s140
      %s158 = sphi 0, %s158
      %s160 = sphi 0, %s158
      %s161 = sphi 0, %s160
      %s175 = sphi 0, %s161
      %s181 = sphi 0, %s183
      %s184 = sphi 0, %s181
      %s185 = sphi 0, %s184
      %s201 = sphi 0, %s185
    $region4: #{tpu_custom_call.1} parent=1 // loop_header_branch
      %22 = sbr.rel (%p20) target = $region8
    $region5: #{tpu_custom_call.1} parent=1 // loop_body
      %s24 = ssub.s32 %s19, 1
      %s25 = ssub.s32 %s19, 2
      %s26 = sadd.s32 %s19, 1
      %s27 = ssub.s32 %s19, %s26
      %p28 = scmp.eq.s32.totalorder %s27, 0
      %s30 = sadd.s32 %s29, 1
      %s31 = scalar_select %p28, %s29, %s30
      %p34 = pneg %p28
      %p35 = scmp.eq.s32.totalorder %s19, 1
      %p36 = por %p34, %p35
      %p37 = scmp.ne.s32.totalorder %s29, %s32
      %p38 = scmp.eq.s32.totalorder %s19, 0
      %p39 = por %p37, %p38
      %p40 = scmp.ne.s32.totalorder %s29, %s32
      %p41 = scmp.eq.s32.totalorder %s24, 1
      %p42 = por %p40, %p41
      %p43 = scmp.ne.s32.totalorder %s32, %s33
      %p44 = scmp.eq.s32.totalorder %s24, 0
      %p45 = por %p43, %p44
      %p46 = scmp.ne.s32.totalorder %s32, %s33
      %p47 = scmp.eq.s32.totalorder %s25, 1
      %p48 = por %p46, %p47
      %p50 = scmp.ne.s32.totalorder %s33, %s49
      %p51 = scmp.eq.s32.totalorder %s25, 0
      %p52 = por %p50, %p51
      %s54 = sadd.s32 %s53, 1
      %p57 = scmp.eq.s32.totalorder %s19, 1
      %p58 = scmp.ne.s32.totalorder %s53, %s55
      %p59 = scmp.eq.s32.totalorder %s19, 0
      %p60 = por %p58, %p59
      %p61 = scmp.ne.s32.totalorder %s53, %s55
      %p62 = scmp.eq.s32.totalorder %s24, 1
      %p63 = por %p61, %p62
      %p64 = scmp.ne.s32.totalorder %s55, %s56
      %p65 = scmp.eq.s32.totalorder %s24, 0
      %p66 = por %p64, %p65
      %p67 = scmp.ne.s32.totalorder %s55, %s56
      %p68 = scmp.eq.s32.totalorder %s25, 1
      %p69 = por %p67, %p68
      %p71 = scmp.ne.s32.totalorder %s56, %s70
      %p72 = scmp.eq.s32.totalorder %s25, 0
      %p73 = por %p71, %p72
      %s75 = sadd.s32 %s74, 1
      %p78 = scmp.eq.s32.totalorder %s19, 1
      %p79 = scmp.ne.s32.totalorder %s74, %s76
      %p80 = scmp.eq.s32.totalorder %s19, 0
      %p81 = por %p79, %p80
      %p82 = scmp.ne.s32.totalorder %s74, %s76
      %p83 = scmp.eq.s32.totalorder %s24, 1
      %p84 = por %p82, %p83
      %p85 = scmp.ne.s32.totalorder %s76, %s77
      %p86 = scmp.eq.s32.totalorder %s24, 0
      %p87 = por %p85, %p86
      %p88 = scmp.ne.s32.totalorder %s76, %s77
      %p89 = scmp.eq.s32.totalorder %s25, 1
      %p90 = por %p88, %p89
      %p92 = scmp.ne.s32.totalorder %s77, %s91
      %p93 = scmp.eq.s32.totalorder %s25, 0
      %p94 = por %p92, %p93
      %s96 = sadd.s32 %s95, 1
      %p99 = scmp.eq.s32.totalorder %s19, 1
      %p100 = scmp.ne.s32.totalorder %s95, %s97
      %p101 = scmp.eq.s32.totalorder %s19, 0
      %p102 = por %p100, %p101
      %p103 = scmp.ne.s32.totalorder %s95, %s97
      %p104 = scmp.eq.s32.totalorder %s24, 1
      %p105 = por %p103, %p104
      %p106 = scmp.ne.s32.totalorder %s97, %s98
      %p107 = scmp.eq.s32.totalorder %s24, 0
      %p108 = por %p106, %p107
      %p109 = scmp.ne.s32.totalorder %s97, %s98
      %p110 = scmp.eq.s32.totalorder %s25, 1
      %p111 = por %p109, %p110
      %p113 = scmp.ne.s32.totalorder %s98, %s112
      %p114 = scmp.eq.s32.totalorder %s25, 0
      %p115 = por %p113, %p114
      %s117 = sadd.s32 %s116, 1
      %p120 = scmp.eq.s32.totalorder %s19, 1
      %p121 = scmp.ne.s32.totalorder %s116, %s118
      %p122 = scmp.eq.s32.totalorder %s19, 0
      %p123 = por %p121, %p122
      %p124 = scmp.ne.s32.totalorder %s116, %s118
      %p125 = scmp.eq.s32.totalorder %s24, 1
      %p126 = por %p124, %p125
      %p127 = scmp.ne.s32.totalorder %s118, %s119
      %p128 = scmp.eq.s32.totalorder %s24, 0
      %p129 = por %p127, %p128
      %p130 = scmp.ne.s32.totalorder %s118, %s119
      %p131 = scmp.eq.s32.totalorder %s25, 1
      %p132 = por %p130, %p131
      %p134 = scmp.ne.s32.totalorder %s119, %s133
      %p135 = scmp.eq.s32.totalorder %s25, 0
      %p136 = por %p134, %p135
      %s138 = sadd.s32 %s137, 1
      %p141 = scmp.eq.s32.totalorder %s19, 1
      %p142 = scmp.ne.s32.totalorder %s137, %s139
      %p143 = scmp.eq.s32.totalorder %s19, 0
      %p144 = por %p142, %p143
      %p145 = scmp.ne.s32.totalorder %s137, %s139
      %p146 = scmp.eq.s32.totalorder %s24, 1
      %p147 = por %p145, %p146
      %p148 = scmp.ne.s32.totalorder %s139, %s140
      %p149 = scmp.eq.s32.totalorder %s24, 0
      %p150 = por %p148, %p149
      %p151 = scmp.ne.s32.totalorder %s139, %s140
      %p152 = scmp.eq.s32.totalorder %s25, 1
      %p153 = por %p151, %p152
      %p155 = scmp.ne.s32.totalorder %s140, %s154
      %p156 = scmp.eq.s32.totalorder %s25, 0
      %p157 = por %p155, %p156
      %s159 = sadd.s32 %s158, 1
      %p162 = scmp.eq.s32.totalorder %s19, 1
      %p163 = scmp.ne.s32.totalorder %s158, %s160
      %p164 = scmp.eq.s32.totalorder %s19, 0
      %p165 = por %p163, %p164
      %p166 = scmp.ne.s32.totalorder %s158, %s160
      %p167 = scmp.eq.s32.totalorder %s24, 1
      %p168 = por %p166, %p167
      %p169 = scmp.ne.s32.totalorder %s160, %s161
      %p170 = scmp.eq.s32.totalorder %s24, 0
      %p171 = por %p169, %p170
      %p172 = scmp.ne.s32.totalorder %s160, %s161
      %p173 = scmp.eq.s32.totalorder %s25, 1
      %p174 = por %p172, %p173
      %p176 = scmp.ne.s32.totalorder %s161, %s175
      %p177 = scmp.eq.s32.totalorder %s25, 0
      %p178 = por %p176, %p177
      %s179 = ssub.s32 %s19, %s26
      %p180 = scmp.eq.s32.totalorder %s179, 0
      %s182 = sadd.s32 %s181, 1
      %s183 = scalar_select %p180, %s181, %s182
      %p186 = pneg %p180
      %p187 = scmp.eq.s32.totalorder %s19, 1
      %p188 = por %p186, %p187
      %p189 = scmp.ne.s32.totalorder %s181, %s184
      %p190 = scmp.eq.s32.totalorder %s19, 0
      %p191 = por %p189, %p190
      %p192 = scmp.ne.s32.totalorder %s181, %s184
      %p193 = scmp.eq.s32.totalorder %s24, 1
      %p194 = por %p192, %p193
      %p195 = scmp.ne.s32.totalorder %s184, %s185
      %p196 = scmp.eq.s32.totalorder %s24, 0
      %p197 = por %p195, %p196
      %p198 = scmp.ne.s32.totalorder %s184, %s185
      %p199 = scmp.eq.s32.totalorder %s25, 1
      %p200 = por %p198, %p199
      %p202 = scmp.ne.s32.totalorder %s185, %s201
      %p203 = scmp.eq.s32.totalorder %s25, 0
      %p204 = por %p202, %p203
      %p205 = scmp.le.s32.totalorder 1, %s19
      %p206 = scmp.lt.s32.totalorder %s19, 3
      %p207 = pnand %p205, %p206
      %p208 = pneg %p207
      // Predicated region
      $region9: #{tpu_custom_call.1} parent=5 // pred_check
        _
      $region10: #{tpu_custom_call.1} parent=5 // pred_check_branch
        %210 = sbr.rel (%p207) target = $region12
      $region11: #{tpu_custom_call.1} parent=5 // pred_region
        %s211 = ssub.s32 %s19, 1
        // Predicated region
        $region13: #{tpu_custom_call.1} parent=11 // pred_check
          %p212 = pneg %p66
        $region14: #{tpu_custom_call.1} parent=11 // pred_check_branch
          %214 = sbr.rel (%p212) target = $region16
        $region15: #{tpu_custom_call.1} parent=11 // pred_region
          _
        $region16: #{tpu_custom_call.1} parent=11 // pred_fallthru
          _
        // Predicated region
        $region17: #{tpu_custom_call.1} parent=11 // pred_check
          %p215 = pneg %p87
        $region18: #{tpu_custom_call.1} parent=11 // pred_check_branch
          %217 = sbr.rel (%p215) target = $region20
        $region19: #{tpu_custom_call.1} parent=11 // pred_region
          _
        $region20: #{tpu_custom_call.1} parent=11 // pred_fallthru
          _
        // Predicated region
        $region21: #{tpu_custom_call.1} parent=11 // pred_check
          %p218 = pneg %p108
        $region22: #{tpu_custom_call.1} parent=11 // pred_check_branch
          %220 = sbr.rel (%p218) target = $region24
        $region23: #{tpu_custom_call.1} parent=11 // pred_region
          _
        $region24: #{tpu_custom_call.1} parent=11 // pred_fallthru
          _
        // Predicated region
        $region25: #{tpu_custom_call.1} parent=11 // pred_check
          %p221 = pneg %p129
        $region26: #{tpu_custom_call.1} parent=11 // pred_check_branch
          %223 = sbr.rel (%p221) target = $region28
        $region27: #{tpu_custom_call.1} parent=11 // pred_region
          _
        $region28: #{tpu_custom_call.1} parent=11 // pred_fallthru
          _
        // Predicated region
        $region29: #{tpu_custom_call.1} parent=11 // pred_check
          %p224 = pneg %p150
        $region30: #{tpu_custom_call.1} parent=11 // pred_check_branch
          %226 = sbr.rel (%p224) target = $region32
        $region31: #{tpu_custom_call.1} parent=11 // pred_region
          _
        $region32: #{tpu_custom_call.1} parent=11 // pred_fallthru
          _
        // Predicated region
        $region33: #{tpu_custom_call.1} parent=11 // pred_check
          %p227 = pneg %p171
        $region34: #{tpu_custom_call.1} parent=11 // pred_check_branch
          %229 = sbr.rel (%p227) target = $region36
        $region35: #{tpu_custom_call.1} parent=11 // pred_region
          _
        $region36: #{tpu_custom_call.1} parent=11 // pred_fallthru
          _
      $region12: #{tpu_custom_call.1} parent=5 // pred_fallthru
        _
      %p230 = scmp.lt.s32.totalorder %s19, 2
      // Predicated region
      $region37: #{tpu_custom_call.1} parent=5 // pred_check
        %p231 = pneg %p230
      $region38: #{tpu_custom_call.1} parent=5 // pred_check_branch
        %233 = sbr.rel (%p231) target = $region40
      $region39: #{tpu_custom_call.1} parent=5 // pred_region
        // Predicated region
        $region41: #{tpu_custom_call.1} parent=39 // pred_check
          %p234 = pneg %p39
        $region42: #{tpu_custom_call.1} parent=39 // pred_check_branch
          %236 = sbr.rel (%p234) target = $region44
        $region43: #{tpu_custom_call.1} parent=39 // pred_region
          %s237 = sand.u32 %s29, 1
          %s238 = scalar_lea.sflag [#allocation3], %s237
          %s239 = sand.u32 %s29, 1
          %s240 = smul.addr %s239, 16
          %s241 = scalar_lea.vmem [#allocation2], %s240
          %s243 = ssub.s32 256, 256
          %244 = vsyncadd %s238, %s243
          %s245 = smul.addr %s19, 2
          %s246 = smul.addr %s245, 128
          %s247 = scalar_lea.hbm %s0, %s246
          %s249 = sshll.u32 %s241, 4
          %s250 = int_to_ptr.vmem [resolvable:$true] %s249
          %252 = dma.hbm_to_vmem [thread:$0]  %s247, 256, %s250, %s238
        $region44: #{tpu_custom_call.1} parent=39 // pred_fallthru
          _
      $region40: #{tpu_custom_call.1} parent=5 // pred_fallthru
        _
      %p253 = scmp.le.s32.totalorder 1, %s19
      %p254 = scmp.lt.s32.totalorder %s19, 3
      %p255 = pnand %p253, %p254
      %p256 = pneg %p255
      // Predicated region
      $region45: #{tpu_custom_call.1} parent=5 // pred_check
        _
      $region46: #{tpu_custom_call.1} parent=5 // pred_check_branch
        %258 = sbr.rel (%p255) target = $region48
      $region47: #{tpu_custom_call.1} parent=5 // pred_region
        %s259 = ssub.s32 %s19, 1
        %s260 = sand.u32 %s32, 1
        %s261 = scalar_lea.sflag [#allocation3], %s260
        %s262 = sand.u32 %s32, 1
        %s263 = smul.addr %s262, 16
        %s264 = scalar_lea.vmem [#allocation2], %s263
        // Predicated region
        $region49: #{tpu_custom_call.1} parent=47 // pred_check
          %p265 = pneg %p45
        $region50: #{tpu_custom_call.1} parent=47 // pred_check_branch
          %267 = sbr.rel (%p265) target = $region52
        $region51: #{tpu_custom_call.1} parent=47 // pred_region
          %268 = dma.done %s261, 256
        $region52: #{tpu_custom_call.1} parent=47 // pred_fallthru
          _
        %s269 = sand.u32 %s32, 1
        %s270 = scalar_lea.sflag [#allocation3], %s269
        %s271 = sand.u32 %s32, 1
        %s272 = smul.addr %s271, 16
        %s273 = scalar_lea.vmem [#allocation2], %s272
        %p274 = pneg %p45
        %p275 = pneg %p42
        %p276 = pneg %p66
        %p277 = pneg %p63
        %p278 = pneg %p87
        %p279 = pneg %p84
        %p280 = pneg %p108
        %p281 = pneg %p105
        %p282 = pneg %p129
        %p283 = pneg %p126
        %p284 = pneg %p150
        %p285 = pneg %p147
        %p286 = pneg %p171
        %p287 = pneg %p168
        %p288 = pneg %p197
        %p289 = pneg %p194
        %s290 = sand.u32 %s184, 1
        %s291 = scalar_lea.sflag [#allocation4], %s290
        %s292 = sand.u32 %s184, 1
        %s293 = smul.addr %s292, 16
        %s294 = scalar_lea.vmem [#allocation5], %s293
        %v295 = vld [vmem:[%s264] sm:$0xff]
        %v296 = vld [vmem:[%s264 + $0x8] sm:$0xff]
        %v297 = vld [vmem:[%s1] sm:$0xf]
        %299 = vset.pattern.permute.xlu0 0
        %300 = vperm.xlu0 %299, %v297
        %v301 = vpop.permute.xlu0 %300
        %v303 = vlaneseq
        %v304 = vshrl.u32 %v303, 7
        %v305 = vsub.s32 4, %v304
        %v306 = vrot.slane %v295, %v305
        %v307 = vlaneseq
        %v308 = vshrl.u32 %v307, 7
        %v309 = vsub.s32 4, %v308
        %v310 = vrot.slane %v296, %v309
        %v311 = vmul.f32 %v301, %v306
        %v312 = vmul.f32 %v301, %v310
        %313 = vset.pattern.permute.xlu0 1
        %314 = vperm.xlu0 %313, %v297
        %v315 = vpop.permute.xlu0 %314
        %v317 = vlaneseq
        %v318 = vshrl.u32 %v317, 7
        %v319 = vsub.s32 5, %v318
        %v320 = vrot.slane %v295, %v319
        %v321 = vlaneseq
        %v322 = vshrl.u32 %v321, 7
        %v323 = vsub.s32 5, %v322
        %v324 = vrot.slane %v296, %v323
        %v325 = vmul.f32 %v315, %v320
        %v326 = vmul.f32 %v315, %v324
        %v327 = vadd.f32 %v311, %v325
        %v328 = vadd.f32 %v312, %v326
        %329 = vset.pattern.permute.xlu0 2
        %330 = vperm.xlu0 %329, %v297
        %v331 = vpop.permute.xlu0 %330
        %v333 = vlaneseq
        %v334 = vshrl.u32 %v333, 7
        %v335 = vsub.s32 6, %v334
        %v336 = vrot.slane %v295, %v335
        %v337 = vlaneseq
        %v338 = vshrl.u32 %v337, 7
        %v339 = vsub.s32 6, %v338
        %v340 = vrot.slane %v296, %v339
        %v341 = vmul.f32 %v331, %v336
        %v342 = vmul.f32 %v331, %v340
        %v343 = vadd.f32 %v327, %v341
        %v344 = vadd.f32 %v328, %v342
        %345 = vset.pattern.permute.xlu0 3
        %346 = vperm.xlu0 %345, %v297
        %v347 = vpop.permute.xlu0 %346
        %v349 = vlaneseq
        %v350 = vshrl.u32 %v349, 7
        %v351 = vsub.s32 7, %v350
        %v352 = vrot.slane %v295, %v351
        %v353 = vlaneseq
        %v354 = vshrl.u32 %v353, 7
        %v355 = vsub.s32 7, %v354
        %v356 = vrot.slane %v296, %v355
        %v357 = vmul.f32 %v347, %v352
        %v358 = vmul.f32 %v347, %v356
        %v359 = vadd.f32 %v343, %v357
        %v360 = vadd.f32 %v344, %v358
        %v361 = vld [vmem:[%s2] sm:$0xf]
        %363 = vset.pattern.permute.xlu0 0
        %364 = vperm.xlu0 %363, %v361
        %v365 = vpop.permute.xlu0 %364
        %v367 = vadd.f32 %v359, %v365
        %v368 = vadd.f32 %v360, %v365
        %v369 = vmax.f32 %v367, 0.0
        %v370 = vmax.f32 %v368, 0.0
        %v371 = vlaneseq
        %v372 = vand.u32 %v371, 127
        %v373 = vadd.s32 %v372, 128
        %vm374 = vcmp.lt.s32.totalorder %v372, 0
        %v375 = vsub.s32 0, %v372
        %v376 = vsel %vm374, %v375, %v372
        %v377 = vshrl.u32 %v376, 4
        %v378 = vand.u32 %v376, 15
        %v379 = vsub.s32 0, %v378
        %v380 = vsel %vm374, %v379, %v378
        %vm381 = vcmp.lt.s32.totalorder %v373, 0
        %v382 = vsub.s32 0, %v373
        %v383 = vsel %vm381, %v382, %v373
        %v384 = vshrl.u32 %v383, 4
        %v385 = vand.u32 %v383, 15
        %v386 = vsub.s32 0, %v385
        %v387 = vsel %vm381, %v386, %v385
        %vm388 = vcmp.ne.s32.totalorder %v380, 0
        %vm389 = vcmp.ne.s32.totalorder %v387, 0
        %vm390 = vcmp.lt.s32.totalorder %v380, 0
        %vm391 = vcmp.lt.s32.totalorder %v387, 0
        %vm392 = vmand %vm390, %vm388
        %vm393 = vmand %vm391, %vm389
        %v394 = vadd.s32 %v380, 16
        %v395 = vadd.s32 %v387, 16
        %v396 = vsel %vm392, %v394, %v380
        %v397 = vsel %vm393, %v395, %v387
        %vm398 = vcmp.ge.s32.totalorder %v396, 1
        %vm399 = vcmp.ge.s32.totalorder %v397, 1
        %vm400 = vcmp.le.s32.totalorder %v396, 14
        %vm401 = vcmp.le.s32.totalorder %v397, 14
        %v402 = vld [vmem:[%s3] sm:$0xf]
        %405 = vrot.lane.b32.xlu0 %v369, 17
        %v406 = vpop.permute.xlu0 %405
        %407 = vrot.lane.b32.xlu0 %v370, 17
        %v408 = vpop.permute.xlu0 %407
        %vm409 = vcmask 138240
        %v410 = vsel %vm409, %v406, %v408
        %v413 = vsel %vm409, 0.0, %v406
        %v414 = vsel %vm398, 1, 0
        %v415 = vsel %vm399, 1, 0
        %vm416 = vcmp.eq.s32.totalorder %v414, 1
        %vm417 = vcmp.eq.s32.totalorder %v415, 1
        %v418 = vsel %vm416, %v413, 0.0
        %v419 = vsel %vm417, %v410, 0.0
        %421 = vset.pattern.permute.xlu0 0
        %422 = vperm.xlu0 %421, %v402
        %v423 = vpop.permute.xlu0 %422
        %v425 = vmul.f32 %v423, %v418
        %v426 = vmul.f32 %v423, %v419
        %v427 = vadd.f32 %v425, 0.0
        %v428 = vadd.f32 %v426, 0.0
        %429 = vrot.lane.b32.xlu0 %v369, 16
        %v430 = vpop.permute.xlu0 %429
        %431 = vrot.lane.b32.xlu0 %v370, 16
        %v432 = vpop.permute.xlu0 %431
        %vm433 = vcmask 130048
        %v434 = vsel %vm433, %v430, %v432
        %v437 = vsel %vm433, 0.0, %v430
        %438 = vset.pattern.permute.xlu0 1
        %439 = vperm.xlu0 %438, %v402
        %v440 = vpop.permute.xlu0 %439
        %v442 = vmul.f32 %v440, %v437
        %v443 = vmul.f32 %v440, %v434
        %v444 = vadd.f32 %v427, %v442
        %v445 = vadd.f32 %v428, %v443
        %446 = vrot.lane.b32.xlu0 %v369, 15
        %v447 = vpop.permute.xlu0 %446
        %448 = vrot.lane.b32.xlu0 %v370, 15
        %v449 = vpop.permute.xlu0 %448
        %vm450 = vcmask 121856
        %v451 = vsel %vm450, %v447, %v449
        %v454 = vsel %vm450, 0.0, %v447
        %v455 = vsel %vm400, 1, 0
        %v456 = vsel %vm401, 1, 0
        %vm457 = vcmp.eq.s32.totalorder %v455, 1
        %vm458 = vcmp.eq.s32.totalorder %v456, 1
        %v459 = vsel %vm457, %v454, 0.0
        %v460 = vsel %vm458, %v451, 0.0
        %461 = vset.pattern.permute.xlu0 2
        %462 = vperm.xlu0 %461, %v402
        %v463 = vpop.permute.xlu0 %462
        %v465 = vmul.f32 %v463, %v459
        %v466 = vmul.f32 %v463, %v460
        %v467 = vadd.f32 %v444, %v465
        %v468 = vadd.f32 %v445, %v466
        %469 = vrot.lane.b32.xlu0 %v369, 1
        %v470 = vpop.permute.xlu0 %469
        %471 = vrot.lane.b32.xlu0 %v370, 1
        %v472 = vpop.permute.xlu0 %471
        %vm473 = vcmask 7168
        %v474 = vsel %vm473, %v470, %v472
        %v477 = vsel %vm473, 0.0, %v470
        %v478 = vsel %vm416, %v477, 0.0
        %v479 = vsel %vm417, %v474, 0.0
        %480 = vset.pattern.permute.xlu0 3
        %481 = vperm.xlu0 %480, %v402
        %v482 = vpop.permute.xlu0 %481
        %v484 = vmul.f32 %v482, %v478
        %v485 = vmul.f32 %v482, %v479
        %v486 = vadd.f32 %v467, %v484
        %v487 = vadd.f32 %v468, %v485
        %488 = vset.pattern.permute.xlu0 4
        %489 = vperm.xlu0 %488, %v402
        %v490 = vpop.permute.xlu0 %489
        %v492 = vmul.f32 %v490, %v369
        %v493 = vmul.f32 %v490, %v370
        %v494 = vadd.f32 %v486, %v492
        %v495 = vadd.f32 %v487, %v493
        %496 = vrot.lane.b32.xlu0 %v369, 127
        %v497 = vpop.permute.xlu0 %496
        %498 = vrot.lane.b32.xlu0 %v370, 127
        %v499 = vpop.permute.xlu0 %498
        %vm500 = vcmask 1039360
        %v501 = vsel %vm500, %v497, %v499
        %v504 = vsel %vm500, %v499, 0.0
        %v505 = vsel %vm457, %v501, 0.0
        %v506 = vsel %vm458, %v504, 0.0
        %507 = vset.pattern.permute.xlu0 5
        %508 = vperm.xlu0 %507, %v402
        %v509 = vpop.permute.xlu0 %508
        %v511 = vmul.f32 %v509, %v505
        %v512 = vmul.f32 %v509, %v506
        %v513 = vadd.f32 %v494, %v511
        %v514 = vadd.f32 %v495, %v512
        %515 = vrot.lane.b32.xlu0 %v369, 113
        %v516 = vpop.permute.xlu0 %515
        %517 = vrot.lane.b32.xlu0 %v370, 113
        %v518 = vpop.permute.xlu0 %517
        %vm519 = vcmask 924672
        %v520 = vsel %vm519, %v516, %v518
        %v523 = vsel %vm519, %v518, 0.0
        %v524 = vsel %vm416, %v520, 0.0
        %v525 = vsel %vm417, %v523, 0.0
        %526 = vset.pattern.permute.xlu0 6
        %527 = vperm.xlu0 %526, %v402
        %v528 = vpop.permute.xlu0 %527
        %v530 = vmul.f32 %v528, %v524
        %v531 = vmul.f32 %v528, %v525
        %v532 = vadd.f32 %v513, %v530
        %v533 = vadd.f32 %v514, %v531
        %534 = vrot.lane.b32.xlu0 %v369, 112
        %v535 = vpop.permute.xlu0 %534
        %536 = vrot.lane.b32.xlu0 %v370, 112
        %v537 = vpop.permute.xlu0 %536
        %vm538 = vcmask 916480
        %v539 = vsel %vm538, %v535, %v537
        %v542 = vsel %vm538, %v537, 0.0
        %543 = vset.pattern.permute.xlu0 7
        %544 = vperm.xlu0 %543, %v402
        %v545 = vpop.permute.xlu0 %544
        %v547 = vmul.f32 %v545, %v539
        %v548 = vmul.f32 %v545, %v542
        %v549 = vadd.f32 %v532, %v547
        %v550 = vadd.f32 %v533, %v548
        %551 = vrot.lane.b32.xlu0 %v369, 111
        %v552 = vpop.permute.xlu0 %551
        %553 = vrot.lane.b32.xlu0 %v370, 111
        %v554 = vpop.permute.xlu0 %553
        %vm555 = vcmask 908288
        %v556 = vsel %vm555, %v552, %v554
        %v559 = vsel %vm555, %v554, 0.0
        %v560 = vsel %vm457, %v556, 0.0
        %v561 = vsel %vm458, %v559, 0.0
        %562 = vset.pattern.permute.xlu0 8
        %563 = vperm.xlu0 %562, %v402
        %v564 = vpop.permute.xlu0 %563
        %v566 = vmul.f32 %v564, %v560
        %v567 = vmul.f32 %v564, %v561
        %v568 = vadd.f32 %v549, %v566
        %v569 = vadd.f32 %v550, %v567
        %v570 = vld [vmem:[%s4] sm:$0xf]
        %572 = vset.pattern.permute.xlu0 0
        %573 = vperm.xlu0 %572, %v570
        %v574 = vpop.permute.xlu0 %573
        %v576 = vadd.f32 %v568, %v574
        %v577 = vadd.f32 %v569, %v574
        %v578 = vld [vmem:[%s5] sm:$0xff]
        %580 = vset.pattern.permute.xlu0 0
        %581 = vperm.xlu0 %580, %v578
        %v582 = vpop.permute.xlu0 %581
        %v584 = vlaneseq
        %v585 = vshrl.u32 %v584, 7
        %v586 = vsub.s32 0, %v585
        %v587 = vrot.slane %v295, %v586
        %v588 = vlaneseq
        %v589 = vshrl.u32 %v588, 7
        %v590 = vsub.s32 0, %v589
        %v591 = vrot.slane %v296, %v590
        %v592 = vmul.f32 %v582, %v587
        %v593 = vmul.f32 %v582, %v591
        %594 = vset.pattern.permute.xlu0 1
        %595 = vperm.xlu0 %594, %v578
        %v596 = vpop.permute.xlu0 %595
        %v598 = vlaneseq
        %v599 = vshrl.u32 %v598, 7
        %v600 = vsub.s32 1, %v599
        %v601 = vrot.slane %v295, %v600
        %v602 = vlaneseq
        %v603 = vshrl.u32 %v602, 7
        %v604 = vsub.s32 1, %v603
        %v605 = vrot.slane %v296, %v604
        %v606 = vmul.f32 %v596, %v601
        %v607 = vmul.f32 %v596, %v605
        %v608 = vadd.f32 %v592, %v606
        %v609 = vadd.f32 %v593, %v607
        %610 = vset.pattern.permute.xlu0 2
        %611 = vperm.xlu0 %610, %v578
        %v612 = vpop.permute.xlu0 %611
        %v614 = vlaneseq
        %v615 = vshrl.u32 %v614, 7
        %v616 = vsub.s32 2, %v615
        %v617 = vrot.slane %v295, %v616
        %v618 = vlaneseq
        %v619 = vshrl.u32 %v618, 7
        %v620 = vsub.s32 2, %v619
        %v621 = vrot.slane %v296, %v620
        %v622 = vmul.f32 %v612, %v617
        %v623 = vmul.f32 %v612, %v621
        %v624 = vadd.f32 %v608, %v622
        %v625 = vadd.f32 %v609, %v623
        %626 = vset.pattern.permute.xlu0 3
        %627 = vperm.xlu0 %626, %v578
        %v628 = vpop.permute.xlu0 %627
        %v630 = vlaneseq
        %v631 = vshrl.u32 %v630, 7
        %v632 = vsub.s32 3, %v631
        %v633 = vrot.slane %v295, %v632
        %v634 = vlaneseq
        %v635 = vshrl.u32 %v634, 7
        %v636 = vsub.s32 3, %v635
        %v637 = vrot.slane %v296, %v636
        %v638 = vmul.f32 %v628, %v633
        %v639 = vmul.f32 %v628, %v637
        %v640 = vadd.f32 %v624, %v638
        %v641 = vadd.f32 %v625, %v639
        %642 = vset.pattern.permute.xlu0 4
        %643 = vperm.xlu0 %642, %v578
        %v644 = vpop.permute.xlu0 %643
        %v646 = vlaneseq
        %v647 = vshrl.u32 %v646, 7
        %v648 = vsub.s32 0, %v647
        %v649 = vrot.slane %v576, %v648
        %v650 = vlaneseq
        %v651 = vshrl.u32 %v650, 7
        %v652 = vsub.s32 0, %v651
        %v653 = vrot.slane %v577, %v652
        %v654 = vmul.f32 %v644, %v649
        %v655 = vmul.f32 %v644, %v653
        %v656 = vadd.f32 %v640, %v654
        %v657 = vadd.f32 %v641, %v655
        %658 = vset.pattern.permute.xlu0 5
        %659 = vperm.xlu0 %658, %v578
        %v660 = vpop.permute.xlu0 %659
        %v662 = vlaneseq
        %v663 = vshrl.u32 %v662, 7
        %v664 = vsub.s32 1, %v663
        %v665 = vrot.slane %v576, %v664
        %v666 = vlaneseq
        %v667 = vshrl.u32 %v666, 7
        %v668 = vsub.s32 1, %v667
        %v669 = vrot.slane %v577, %v668
        %v670 = vmul.f32 %v660, %v665
        %v671 = vmul.f32 %v660, %v669
        %v672 = vadd.f32 %v656, %v670
        %v673 = vadd.f32 %v657, %v671
        %674 = vset.pattern.permute.xlu0 6
        %675 = vperm.xlu0 %674, %v578
        %v676 = vpop.permute.xlu0 %675
        %v678 = vlaneseq
        %v679 = vshrl.u32 %v678, 7
        %v680 = vsub.s32 2, %v679
        %v681 = vrot.slane %v576, %v680
        %v682 = vlaneseq
        %v683 = vshrl.u32 %v682, 7
        %v684 = vsub.s32 2, %v683
        %v685 = vrot.slane %v577, %v684
        %v686 = vmul.f32 %v676, %v681
        %v687 = vmul.f32 %v676, %v685
        %v688 = vadd.f32 %v672, %v686
        %v689 = vadd.f32 %v673, %v687
        %690 = vset.pattern.permute.xlu0 7
        %691 = vperm.xlu0 %690, %v578
        %v692 = vpop.permute.xlu0 %691
        %v694 = vlaneseq
        %v695 = vshrl.u32 %v694, 7
        %v696 = vsub.s32 3, %v695
        %v697 = vrot.slane %v576, %v696
        %v698 = vlaneseq
        %v699 = vshrl.u32 %v698, 7
        %v700 = vsub.s32 3, %v699
        %v701 = vrot.slane %v577, %v700
        %v702 = vmul.f32 %v692, %v697
        %v703 = vmul.f32 %v692, %v701
        %v704 = vadd.f32 %v688, %v702
        %v705 = vadd.f32 %v689, %v703
        %v706 = vld [vmem:[%s6] sm:$0xff]
        %708 = vset.pattern.permute.xlu0 0
        %709 = vperm.xlu0 %708, %v706
        %v710 = vpop.permute.xlu0 %709
        %v712 = vadd.f32 %v704, %v710
        %v713 = vadd.f32 %v705, %v710
        %v714 = vlaneseq
        %v715 = vshrl.u32 %v714, 7
        %vm716 = vcmp.lt.s32.totalorder %v715, 0
        %v717 = vsub.s32 0, %v715
        %v718 = vsel %vm716, %v717, %v715
        %v719 = vshrl.u32 %v718, 1
        %v720 = vand.u32 %v718, 1
        %v721 = vsub.s32 0, %v720
        %v722 = vsel %vm716, %v721, %v720
        %vm723 = vcmp.ne.s32.totalorder %v722, 0
        %vm724 = vcmp.lt.s32.totalorder %v722, 0
        %vm725 = vmand %vm724, %vm723
        %v726 = vadd.s32 %v722, 2
        %v727 = vsel %vm725, %v726, %v722
        %vm728 = vcmp.eq.s32.totalorder %v727, 1
        %v729 = vmax.f32 %v712, 0.0
        %v730 = vmax.f32 %v713, 0.0
        %v731 = vsel %vm728, %v729, %v712
        %v732 = vsel %vm728, %v730, %v713
        %733 = vst [vmem:[%s294] sm:$0xff] %v731
        %734 = vst [vmem:[%s294 + $0x8] sm:$0xff] %v732
        %s735 = sand.u32 %s184, 1
        %s736 = scalar_lea.sflag [#allocation4], %s735
        %s737 = sand.u32 %s184, 1
        %s738 = smul.addr %s737, 16
        %s739 = scalar_lea.vmem [#allocation5], %s738
        // Predicated region
        $region53: #{tpu_custom_call.1} parent=47 // pred_check
          %p740 = pneg %p194
        $region54: #{tpu_custom_call.1} parent=47 // pred_check_branch
          %742 = sbr.rel (%p740) target = $region56
        $region55: #{tpu_custom_call.1} parent=47 // pred_region
          %s744 = ssub.s32 256, 256
          %745 = vsyncadd %s736, %s744
          %s746 = smul.addr %s24, 2
          %s747 = smul.addr %s746, 128
          %s748 = scalar_lea.hbm %s7, %s747
          %s750 = sshll.u32 %s739, 4
          %s751 = int_to_ptr.vmem [resolvable:$true] %s750
          %753 = dma.vmem_to_hbm [thread:$0]  %s751, 256, %s748, %s736
        $region56: #{tpu_custom_call.1} parent=47 // pred_fallthru
          _
      $region48: #{tpu_custom_call.1} parent=5 // pred_fallthru
        _
      %p754 = scmp.le.s32.totalorder 2, %s19
      // Predicated region
      $region57: #{tpu_custom_call.1} parent=5 // pred_check
        %p755 = pneg %p754
      $region58: #{tpu_custom_call.1} parent=5 // pred_check_branch
        %757 = sbr.rel (%p755) target = $region60
      $region59: #{tpu_custom_call.1} parent=5 // pred_region
        %s758 = ssub.s32 %s19, 2
        // Predicated region
        $region61: #{tpu_custom_call.1} parent=59 // pred_check
          %p759 = pneg %p200
        $region62: #{tpu_custom_call.1} parent=59 // pred_check_branch
          %761 = sbr.rel (%p759) target = $region64
        $region63: #{tpu_custom_call.1} parent=59 // pred_region
          %s762 = sand.u32 %s185, 1
          %s763 = scalar_lea.sflag [#allocation4], %s762
          %s764 = sand.u32 %s185, 1
          %s765 = smul.addr %s764, 16
          %s766 = scalar_lea.vmem [#allocation5], %s765
          %767 = dma.done %s763, 256
        $region64: #{tpu_custom_call.1} parent=59 // pred_fallthru
          _
      $region60: #{tpu_custom_call.1} parent=5 // pred_fallthru
        _
    $region6: #{tpu_custom_call.1} parent=1 // loop_footer
      %s23 = sadd.s32 1, %s19
    $region7: #{tpu_custom_call.1} parent=1 // loop_footer_branch
      %18 = sbr.rel target = $region3
    $region8: #{tpu_custom_call.1} parent=1 // loop_exit
      _
    %768 = vsyncpa [#allocation3], 1
    %s769 = scalar_lea.sflag [#allocation3], 1
    %770 = vsyncpa %s769, 1
    %771 = vsyncpa [#allocation4], 1
    %s772 = scalar_lea.sflag [#allocation4], 1
    %773 = vsyncpa %s772, 1

</llo_original>
